<compile_context>
chip_gen: v7x
topology: tpu7x:2x2x1
jax: 0.10.0
libtpu: 0.0.40
codegen_flags: <defaults>
</compile_context>

<pallas_src>
import functools

import numpy as np
import jax
import jax.numpy as jnp
from jax.experimental import pallas as pl
from jax.experimental.pallas import tpu as pltpu


# ------------------------------ Pallas kernels ------------------------------
def _make_remap_kernel(has_bias):
    """Per-grid-step (= per batch image) kernel with the 1x1-conv fused in.

    refs: x (1, C*H, W), awt (W, Wout), g (Cout*Hout, C*H), [bias (Cout*Hout,1)],
          out (1, Cout*Hout, Wout)
    """

    def kernel(*refs):
        if has_bias:
            x_ref, awt_ref, g_ref, b_ref, o_ref = refs
        else:
            x_ref, awt_ref, g_ref, o_ref = refs
        # width resize: plain MXU dot, M = C*H rows
        y = jnp.dot(x_ref[0], awt_ref[...], preferred_element_type=jnp.float32)
        # fused height resize + 1x1 conv: (Cout*Hout, C*H) @ (C*H, Wout)
        y = jnp.dot(g_ref[...], y, preferred_element_type=jnp.float32)
        if has_bias:
            y = y + b_ref[...]                      # (Cout*Hout, 1) lane broadcast
        o_ref[0] = y.astype(o_ref.dtype)            # single slab store

    return kernel


def _make_resize_kernel(c, h, w, h_out):
    """No channel remap: separable two-matmul resize only (no conv, no bias).

    refs: x (1, C*H, W), ah (Hout, H), awt (W, Wout), out (1, C*Hout, Wout)
    """

    def kernel(x_ref, ah_ref, awt_ref, o_ref):
        x = x_ref[0].reshape(c, h, w)                                   # leading split
        ahb = jnp.broadcast_to(ah_ref[...][None], (c, h_out, h))
        y = jnp.einsum("coh,chw->cow", ahb, x,
                       preferred_element_type=jnp.float32)              # (C, Hout, W)
        y = y.reshape(c * h_out, w)                                      # leading merge
        y = jnp.dot(y, awt_ref[...], preferred_element_type=jnp.float32)  # (C*Hout, Wout)
        o_ref[0] = y.astype(o_ref.dtype)

    return kernel


# ------------------------------ jitted forward ------------------------------
@functools.partial(jax.jit, static_argnames=("remap", "has_bias"))
def _spatial_rescaler_forward(x, ah, awt, conv_w, conv_b, *, remap, has_bias):
    b, c, h, w = x.shape
    h_out, w_out = ah.shape[0], awt.shape[1]
    c_out = conv_w.shape[0] if remap else c

    # per-image rows ordered (channel, image-row); pure layout plumbing in XLA
    x3 = x.reshape(b, c * h, w)

    x_spec = pl.BlockSpec((1, c * h, w), lambda i: (i, 0, 0))
    awt_spec = pl.BlockSpec((w, w_out), lambda i: (0, 0))       # resident operator

    if remap:
        # Fuse height resize + channel map into one small operator; built inside
        # jit, so it is compiled once and costs nothing per step on the host.
        g = jnp.kron(conv_w, ah)                                 # (Cout*Hout, C*H)
        operands = [x3, awt, g]
        in_specs = [x_spec, awt_spec,
                    pl.BlockSpec((c_out * h_out, c * h), lambda i: (0, 0))]
        if has_bias:
            bias_col = jnp.repeat(conv_b, h_out)[:, None]        # (Cout*Hout, 1)
            operands.append(bias_col)
            in_specs.append(pl.BlockSpec((c_out * h_out, 1), lambda i: (0, 0)))
        kernel = _make_remap_kernel(has_bias)
    else:
        operands = [x3, ah, awt]
        in_specs = [x_spec,
                    pl.BlockSpec((h_out, h), lambda i: (0, 0)),
                    awt_spec]
        kernel = _make_resize_kernel(c, h, w, h_out)

    rows_out = c_out * h_out
    out = pl.pallas_call(
        kernel,
        out_shape=jax.ShapeDtypeStruct((b, rows_out, w_out), x.dtype),
        grid_spec=pltpu.PrefetchScalarGridSpec(
            num_scalar_prefetch=0,
            grid=(b,),                               # one image per step; operators stay resident
            in_specs=in_specs,
            out_specs=pl.BlockSpec((1, rows_out, w_out), lambda i: (i, 0, 0)),
        ),
        compiler_params=pltpu.CompilerParams(
            dimension_semantics=("parallel",),       # shards over v7x's 2 TensorCores
        ),
    )(*operands)
    return out.reshape(b, c_out, h_out, w_out)


# ------------- host-side interpolation-operator construction (cached) -------------
def _bilinear_resize_matrix(in_size, out_size, scale):
    """(out_size, in_size) 1-D bilinear matrix matching
    torch.nn.functional.interpolate(mode='bilinear', align_corners=False)."""
    a = np.zeros((out_size, in_size), dtype=np.float32)
    inv_scale = (1.0 / scale) if (scale is not None and scale > 0) else in_size / out_size
    for i in range(out_size):
        src = max((i + 0.5) * inv_scale - 0.5, 0.0)
        lo = min(int(np.floor(src)), in_size - 1)
        hi = min(lo + 1, in_size - 1)
        w_hi = src - lo
        a[i, lo] += 1.0 - w_hi
        a[i, hi] += w_hi
    return a


def _staged_axis_matrix(size, scale, n_stages):
    """Compose the per-stage bilinear resize matrices for one spatial axis."""
    mat = np.eye(size, dtype=np.float32)
    cur = size
    for _ in range(n_stages):
        nxt = int(np.floor(cur * scale))
        mat = _bilinear_resize_matrix(cur, nxt, scale) @ mat
        cur = nxt
    return mat, cur


# ----------------------------------- module -----------------------------------
class SpatialRescalerPallas:
    """Pallas/TPU port of SpatialRescaler (encode == forward)."""

    def __init__(self, n_stages=1, method="bilinear", multiplier=0.5,
                 in_channels=3, out_channels=None, bias=False, *, key=None):
        assert n_stages >= 0
        assert method in ["nearest", "linear", "bilinear", "trilinear", "bicubic", "area"]
        if method != "bilinear":
            # TODO(synk): only 'bilinear' (the Stable-Diffusion default) is implemented.
            raise NotImplementedError("only method='bilinear' is implemented")
        self.n_stages = n_stages
        self.multiplier = multiplier
        self.in_channels = in_channels
        self.remap_output = out_channels is not None
        self.out_channels = out_channels if self.remap_output else in_channels
        self.has_bias = bool(bias) and self.remap_output

        if self.remap_output:
            key = jax.random.PRNGKey(0) if key is None else key
            wkey, bkey = jax.random.split(key)
            bound = 1.0 / float(np.sqrt(in_channels))        # nn.Conv2d default init range
            self.conv_w = jax.random.uniform(
                wkey, (self.out_channels, in_channels), jnp.float32, -bound, bound)
            self.conv_b = (jax.random.uniform(bkey, (self.out_channels,), jnp.float32,
                                              -bound, bound)
                           if bias else None)
        else:
            self.conv_w = None
            self.conv_b = None

        # (H, W) -> (ah (Hout,H), awt (W,Wout), h_out, w_out); built once per shape
        self._op_cache = {}

    def _ops_for(self, h, w):
        ops = self._op_cache.get((h, w))
        if ops is None:
            a_h, h_out = _staged_axis_matrix(h, self.multiplier, self.n_stages)
            a_w, w_out = _staged_axis_matrix(w, self.multiplier, self.n_stages)
            ops = (jnp.asarray(a_h), jnp.asarray(a_w.T), h_out, w_out)
            self._op_cache[(h, w)] = ops
        return ops

    def __call__(self, x):
        b, c, h, w = x.shape
        assert c == self.in_channels
        ah, awt, _, _ = self._ops_for(h, w)
        return _spatial_rescaler_forward(x, ah, awt, self.conv_w, self.conv_b,
                                         remap=self.remap_output,
                                         has_bias=self.has_bias)

    def encode(self, x):
        return self(x)


if __name__ == "__main__":
    key = jax.random.PRNGKey(0)
    k_x, k_w = jax.random.split(key)

    B, C, H, W = 2, 4, 16, 16
    OUT_C = 8
    x = jax.random.normal(k_x, (B, C, H, W), jnp.float32)

    # Pure-JAX reference resize: bilinear 0.5x with align_corners=False is exactly
    # 2x2 average pooling.
    ref_resized = x.reshape(B, C, H // 2, 2, W // 2, 2).mean(axis=(3, 5))

    # 1) channel remap, bias=False (fused conv path)
    m1 = SpatialRescalerPallas(n_stages=1, method="bilinear", multiplier=0.5,
                               in_channels=C, out_channels=OUT_C, bias=False, key=k_w)
    y1 = m1(x)
    jax.block_until_ready(y1)
    assert y1.shape == (B, OUT_C, H // 2, W // 2), y1.shape
    ref1 = jnp.einsum("oc,bchw->bohw", m1.conv_w, ref_resized, precision="highest")
    assert bool(jnp.allclose(y1, ref1, atol=1e-3, rtol=1e-3)), \
        float(jnp.max(jnp.abs(y1 - ref1)))

    # 2) no channel remap (out_channels=None): pure resize, specialised kernel
    m2 = SpatialRescalerPallas(n_stages=1, multiplier=0.5, in_channels=C)
    y2 = m2(x)
    jax.block_until_ready(y2)
    assert y2.shape == (B, C, H // 2, W // 2), y2.shape
    assert bool(jnp.allclose(y2, ref_resized, atol=1e-3, rtol=1e-3))

    # 3) channel remap with bias=True
    m3 = SpatialRescalerPallas(n_stages=1, multiplier=0.5, in_channels=C,
                               out_channels=OUT_C, bias=True, key=k_w)
    y3 = m3(x)
    jax.block_until_ready(y3)
    ref3 = (jnp.einsum("oc,bchw->bohw", m3.conv_w, ref_resized, precision="highest")
            + m3.conv_b[None, :, None, None])
    assert bool(jnp.allclose(y3, ref3, atol=1e-3, rtol=1e-3)), \
        float(jnp.max(jnp.abs(y3 - ref3)))

    print("KERNEL_OK")
</pallas_src>

<mosaic_0001>
module attributes {stable_mosaic.version = 11 : i64} {
  func.func @kernel(%arg0: i32, %arg1: memref<1x64x16xf32, #tpu.memory_space<vmem>>, %arg2: memref<16x8xf32, #tpu.memory_space<vmem>>, %arg3: memref<64x64xf32, #tpu.memory_space<vmem>>, %arg4: memref<1x64x8xf32, #tpu.memory_space<vmem>>) attributes {dimension_semantics = [#tpu.dimension_semantics<parallel>], iteration_bounds = array<i64: 2>, scalar_prefetch = 0 : i64, scratch_operands = 0 : i64, tpu.core_type = #tpu.core_type<tc>, window_params = [{transform_indices = @transform_0, window_bounds = array<i64: 1, 64, 16>}, {pipeline_mode = #tpu.pipeline_mode<synchronous>, transform_indices = @transform_1, window_bounds = array<i64: 16, 8>}, {pipeline_mode = #tpu.pipeline_mode<synchronous>, transform_indices = @transform_2, window_bounds = array<i64: 64, 64>}, {transform_indices = @transform_3, window_bounds = array<i64: 1, 64, 8>}]} {
    %c0 = arith.constant 0 : index
    %c0_0 = arith.constant 0 : index
    %c0_1 = arith.constant 0 : index
    %0 = vector.load %arg1[%c0, %c0_0, %c0_1] : memref<1x64x16xf32, #tpu.memory_space<vmem>>, vector<1x64x16xf32>
    %1 = vector.shape_cast %0 : vector<1x64x16xf32> to vector<64x16xf32>
    %c0_2 = arith.constant 0 : index
    %c0_3 = arith.constant 0 : index
    %2 = vector.load %arg2[%c0_2, %c0_3] : memref<16x8xf32, #tpu.memory_space<vmem>>, vector<16x8xf32>
    %cst = arith.constant dense<0.000000e+00> : vector<64x8xf32>
    %3 = tpu.matmul %1, %2, %cst {dimension_numbers = #tpu.dot_dimension_numbers<[1], [0], [0], [1], [0, 0, 1, 1], [], []>} : vector<64x16xf32>, vector<16x8xf32>, vector<64x8xf32> -> vector<64x8xf32>
    %c0_4 = arith.constant 0 : index
    %c0_5 = arith.constant 0 : index
    %4 = vector.load %arg3[%c0_4, %c0_5] : memref<64x64xf32, #tpu.memory_space<vmem>>, vector<64x64xf32>
    %cst_6 = arith.constant dense<0.000000e+00> : vector<64x8xf32>
    %5 = tpu.matmul %4, %3, %cst_6 {dimension_numbers = #tpu.dot_dimension_numbers<[1], [0], [0], [1], [0, 0, 1, 1], [], []>} : vector<64x64xf32>, vector<64x8xf32>, vector<64x8xf32> -> vector<64x8xf32>
    %c0_7 = arith.constant 0 : index
    %c0_8 = arith.constant 0 : index
    %c0_9 = arith.constant 0 : index
    %6 = vector.load %arg4[%c0_7, %c0_8, %c0_9] : memref<1x64x8xf32, #tpu.memory_space<vmem>>, vector<1x64x8xf32>
    %7 = vector.shape_cast %6 : vector<1x64x8xf32> to vector<64x8xf32>
    %8 = vector.shape_cast %5 : vector<64x8xf32> to vector<1x64x8xf32>
    tpu.vector_store %arg4[%c0_7, %c0_8, %c0_9], %8 {strides = array<i32>} : memref<1x64x8xf32, #tpu.memory_space<vmem>>, vector<1x64x8xf32>,
    return
  }
  func.func @transform_0(%arg0: i32) -> (i32, i32, i32) {
    %c0_i32 = arith.constant 0 : i32
    %c0_i32_0 = arith.constant 0 : i32
    %c0_i32_1 = arith.constant 0 : i32
    return %arg0, %c0_i32, %c0_i32_0 : i32, i32, i32
  }
  func.func @transform_1(%arg0: i32) -> (i32, i32) {
    %c0_i32 = arith.constant 0 : i32
    %c0_i32_0 = arith.constant 0 : i32
    %c0_i32_1 = arith.constant 0 : i32
    return %c0_i32, %c0_i32_0 : i32, i32
  }
  func.func @transform_2(%arg0: i32) -> (i32, i32) {
    %c0_i32 = arith.constant 0 : i32
    %c0_i32_0 = arith.constant 0 : i32
    %c0_i32_1 = arith.constant 0 : i32
    return %c0_i32, %c0_i32_0 : i32, i32
  }
  func.func @transform_3(%arg0: i32) -> (i32, i32, i32) {
    %c0_i32 = arith.constant 0 : i32
    %c0_i32_0 = arith.constant 0 : i32
    %c0_i32_1 = arith.constant 0 : i32
    return %arg0, %c0_i32, %c0_i32_0 : i32, i32, i32
  }
}

</mosaic_0001>

<llo_original>
// kernel: _spatial_rescaler_forward.1
$region0: #{_spatial_rescaler_forward.1}
  #allocation0 [shape = 'u32[]', space=smem, size = 0x4, offset = 0x4, fixed_abs, tag = 'smem constant byte address 0x4 - core index']
  #allocation1 [shape = 'u32[144,128]{1,0:T(1,128)}', space=vmem, size = 0x12000, scoped, tag = 'internal scratch']
  %s0 = inlined_call_operand.vmem [shape: f32[2,64,16], index: 0, kind: input, shape index: {}]
  %s1 = inlined_call_operand.vmem [shape: f32[16,8], index: 1, kind: input, shape index: {}]
  %s2 = inlined_call_operand.vmem [shape: f32[64,64], index: 2, kind: input, shape index: {}]
  %s3 = inlined_call_operand.hbm [shape: f32[2,64,8], index: 3, kind: output, shape index: {}]
  %s4 = sld [smem:[#allocation0]]
  $region45: #{_spatial_rescaler_forward.1} parent=0
    _
  %s6 = ssub.s32 1, %s4
  %s7 = scalar_select 0, %s6, %s4
  $region1: #{_spatial_rescaler_forward.1} parent=0
    #allocation2 [shape = 'u8[65536]{0}', space=vmem, size = 0x10000, scoped, tag = 'output window, operand 0']
    #allocation3 [shape = 's32[2]{0}', space=sflag, size = 0x8, scoped, tag = 'scoped memory for _spatial_rescaler_forward.1']
    %8 = vsyncpa [#allocation3], 0
    %s9 = scalar_lea.sflag [#allocation3], 1
    %10 = vsyncpa %s9, 0
    loop: start=0, step=1, limit=4
    $region2: #{_spatial_rescaler_forward.1} parent=1 // loop_pre_header
      _
    $region3: #{_spatial_rescaler_forward.1} parent=1 // loop_header
      %s12 = sphi 0, %s16
      %p13 = scmp.ge.s32.totalorder %s12, 4
      %s22 = sphi 0, %s24
      %s25 = sphi 0, %s22
      %s26 = sphi 0, %s25
      %s42 = sphi 0, %s26
      %s46 = sphi 0, %s46
      %s48 = sphi 0, %s46
      %s49 = sphi 0, %s48
      %s63 = sphi 0, %s49
      %s67 = sphi 0, %s67
      %s69 = sphi 0, %s67
      %s70 = sphi 0, %s69
      %s84 = sphi 0, %s70
      %s90 = sphi 0, %s92
      %s93 = sphi 0, %s90
      %s94 = sphi 0, %s93
      %s110 = sphi 0, %s94
    $region4: #{_spatial_rescaler_forward.1} parent=1 // loop_header_branch
      %15 = sbr.rel (%p13) target = $region8
    $region5: #{_spatial_rescaler_forward.1} parent=1 // loop_body
      %s17 = ssub.s32 %s12, 1
      %s18 = ssub.s32 %s12, 2
      %s19 = sadd.s32 %s12, 1
      %s20 = ssub.s32 %s12, %s19
      %p21 = scmp.eq.s32.totalorder %s20, 0
      %s23 = sadd.s32 %s22, 1
      %s24 = scalar_select %p21, %s22, %s23
      %p27 = pneg %p21
      %p28 = scmp.eq.s32.totalorder %s12, 1
      %p29 = por %p27, %p28
      %p30 = scmp.ne.s32.totalorder %s22, %s25
      %p31 = scmp.eq.s32.totalorder %s12, 0
      %p32 = por %p30, %p31
      %p33 = scmp.ne.s32.totalorder %s22, %s25
      %p34 = scmp.eq.s32.totalorder %s17, 1
      %p35 = por %p33, %p34
      %p36 = scmp.ne.s32.totalorder %s25, %s26
      %p37 = scmp.eq.s32.totalorder %s17, 0
      %p38 = por %p36, %p37
      %p39 = scmp.ne.s32.totalorder %s25, %s26
      %p40 = scmp.eq.s32.totalorder %s18, 1
      %p41 = por %p39, %p40
      %p43 = scmp.ne.s32.totalorder %s26, %s42
      %p44 = scmp.eq.s32.totalorder %s18, 0
      %p45 = por %p43, %p44
      %s47 = sadd.s32 %s46, 1
      %p50 = scmp.eq.s32.totalorder %s12, 1
      %p51 = scmp.ne.s32.totalorder %s46, %s48
      %p52 = scmp.eq.s32.totalorder %s12, 0
      %p53 = por %p51, %p52
      %p54 = scmp.ne.s32.totalorder %s46, %s48
      %p55 = scmp.eq.s32.totalorder %s17, 1
      %p56 = por %p54, %p55
      %p57 = scmp.ne.s32.totalorder %s48, %s49
      %p58 = scmp.eq.s32.totalorder %s17, 0
      %p59 = por %p57, %p58
      %p60 = scmp.ne.s32.totalorder %s48, %s49
      %p61 = scmp.eq.s32.totalorder %s18, 1
      %p62 = por %p60, %p61
      %p64 = scmp.ne.s32.totalorder %s49, %s63
      %p65 = scmp.eq.s32.totalorder %s18, 0
      %p66 = por %p64, %p65
      %s68 = sadd.s32 %s67, 1
      %p71 = scmp.eq.s32.totalorder %s12, 1
      %p72 = scmp.ne.s32.totalorder %s67, %s69
      %p73 = scmp.eq.s32.totalorder %s12, 0
      %p74 = por %p72, %p73
      %p75 = scmp.ne.s32.totalorder %s67, %s69
      %p76 = scmp.eq.s32.totalorder %s17, 1
      %p77 = por %p75, %p76
      %p78 = scmp.ne.s32.totalorder %s69, %s70
      %p79 = scmp.eq.s32.totalorder %s17, 0
      %p80 = por %p78, %p79
      %p81 = scmp.ne.s32.totalorder %s69, %s70
      %p82 = scmp.eq.s32.totalorder %s18, 1
      %p83 = por %p81, %p82
      %p85 = scmp.ne.s32.totalorder %s70, %s84
      %p86 = scmp.eq.s32.totalorder %s18, 0
      %p87 = por %p85, %p86
      %s88 = ssub.s32 %s12, %s19
      %p89 = scmp.eq.s32.totalorder %s88, 0
      %s91 = sadd.s32 %s90, 1
      %s92 = scalar_select %p89, %s90, %s91
      %p95 = pneg %p89
      %p96 = scmp.eq.s32.totalorder %s12, 1
      %p97 = por %p95, %p96
      %p98 = scmp.ne.s32.totalorder %s90, %s93
      %p99 = scmp.eq.s32.totalorder %s12, 0
      %p100 = por %p98, %p99
      %p101 = scmp.ne.s32.totalorder %s90, %s93
      %p102 = scmp.eq.s32.totalorder %s17, 1
      %p103 = por %p101, %p102
      %p104 = scmp.ne.s32.totalorder %s93, %s94
      %p105 = scmp.eq.s32.totalorder %s17, 0
      %p106 = por %p104, %p105
      %p107 = scmp.ne.s32.totalorder %s93, %s94
      %p108 = scmp.eq.s32.totalorder %s18, 1
      %p109 = por %p107, %p108
      %p111 = scmp.ne.s32.totalorder %s94, %s110
      %p112 = scmp.eq.s32.totalorder %s18, 0
      %p113 = por %p111, %p112
      %p114 = scmp.le.s32.totalorder 1, %s12
      %p115 = scmp.lt.s32.totalorder %s12, 3
      %p116 = pnand %p114, %p115
      %p117 = pneg %p116
      // Predicated region
      $region9: #{_spatial_rescaler_forward.1} parent=5 // pred_check
        _
      $region10: #{_spatial_rescaler_forward.1} parent=5 // pred_check_branch
        %119 = sbr.rel (%p116) target = $region12
      $region11: #{_spatial_rescaler_forward.1} parent=5 // pred_region
        %s120 = ssub.s32 %s12, 1
        // Predicated region
        $region13: #{_spatial_rescaler_forward.1} parent=11 // pred_check
          %p121 = pneg %p59
        $region14: #{_spatial_rescaler_forward.1} parent=11 // pred_check_branch
          %123 = sbr.rel (%p121) target = $region16
        $region15: #{_spatial_rescaler_forward.1} parent=11 // pred_region
          _
        $region16: #{_spatial_rescaler_forward.1} parent=11 // pred_fallthru
          _
        // Predicated region
        $region17: #{_spatial_rescaler_forward.1} parent=11 // pred_check
          %p124 = pneg %p80
        $region18: #{_spatial_rescaler_forward.1} parent=11 // pred_check_branch
          %126 = sbr.rel (%p124) target = $region20
        $region19: #{_spatial_rescaler_forward.1} parent=11 // pred_region
          _
        $region20: #{_spatial_rescaler_forward.1} parent=11 // pred_fallthru
          _
      $region12: #{_spatial_rescaler_forward.1} parent=5 // pred_fallthru
        _
      %p127 = scmp.lt.s32.totalorder %s12, 2
      // Predicated region
      $region21: #{_spatial_rescaler_forward.1} parent=5 // pred_check
        %p128 = pneg %p127
      $region22: #{_spatial_rescaler_forward.1} parent=5 // pred_check_branch
        %130 = sbr.rel (%p128) target = $region24
      $region23: #{_spatial_rescaler_forward.1} parent=5 // pred_region
        // Predicated region
        $region25: #{_spatial_rescaler_forward.1} parent=23 // pred_check
          %p131 = pneg %p32
        $region26: #{_spatial_rescaler_forward.1} parent=23 // pred_check_branch
          %133 = sbr.rel (%p131) target = $region28
        $region27: #{_spatial_rescaler_forward.1} parent=23 // pred_region
          %p134 = scmp.lt.s32.totalorder %s12, 1
          %s135 = scalar_select %p134, %s12, 1
          %s136 = smul.addr %s135, 8
          %s137 = smul.addr %s136, 8
          %s138 = scalar_lea.vmem %s0, %s137
        $region28: #{_spatial_rescaler_forward.1} parent=23 // pred_fallthru
          _
      $region24: #{_spatial_rescaler_forward.1} parent=5 // pred_fallthru
        _
      %p139 = scmp.le.s32.totalorder 1, %s12
      %p140 = scmp.lt.s32.totalorder %s12, 3
      %p141 = pnand %p139, %p140
      %p142 = pneg %p141
      // Predicated region
      $region29: #{_spatial_rescaler_forward.1} parent=5 // pred_check
        _
      $region30: #{_spatial_rescaler_forward.1} parent=5 // pred_check_branch
        %144 = sbr.rel (%p141) target = $region32
      $region31: #{_spatial_rescaler_forward.1} parent=5 // pred_region
        %s145 = ssub.s32 %s12, 1
        %p146 = scmp.lt.s32.totalorder %s17, 1
        %s147 = scalar_select %p146, %s17, 1
        %s148 = smul.addr %s147, 8
        %s149 = smul.addr %s148, 8
        %s150 = scalar_lea.vmem %s0, %s149
        %p151 = pneg %p38
        %p152 = pneg %p35
        %p153 = pneg %p59
        %p154 = pneg %p56
        %p155 = pneg %p80
        %p156 = pneg %p77
        %p157 = pneg %p106
        %p158 = pneg %p103
        %s159 = sand.u32 %s93, 1
        %s160 = scalar_lea.sflag [#allocation3], %s159
        %s161 = sand.u32 %s93, 1
        %s162 = smul.addr %s161, 64
        %s163 = scalar_lea.vmem [#allocation2], %s162
        %p164 = scmp.lt.s32.totalorder %s17, 1
        %s165 = scalar_select %p164, %s17, 1
        %s166 = smul.addr %s165, 8
        %s167 = smul.addr %s166, 8
        %s168 = scalar_lea.vmem %s0, %s167
        %v169 = vld [vmem:[%s168] sm:$0xff]
        %v170 = vld [vmem:[%s168 + $0x8] sm:$0xff]
        %v171 = vld [vmem:[%s168 + $0x10] sm:$0xff]
        %v172 = vld [vmem:[%s168 + $0x18] sm:$0xff]
        %v173 = vld [vmem:[%s168 + $0x20] sm:$0xff]
        %v174 = vld [vmem:[%s168 + $0x28] sm:$0xff]
        %v175 = vld [vmem:[%s168 + $0x30] sm:$0xff]
        %v176 = vld [vmem:[%s168 + $0x38] sm:$0xff]
        %v177 = vld [vmem:[%s1] sm:$0xff]
        %v178 = vld [vmem:[%s1 + $0x8] sm:$0xff]
        %vm179 = vcmask 130048
        %v181 = vsel %vm179, %v169, 0
        %v184 = vsel %vm179, %v170, 0
        %v187 = vsel %vm179, %v171, 0
        %v190 = vsel %vm179, %v172, 0
        %v193 = vsel %vm179, %v173, 0
        %v196 = vsel %vm179, %v174, 0
        %v199 = vsel %vm179, %v175, 0
        %v202 = vsel %vm179, %v176, 0
        %204 = vmatprep.subr.mxu0 0.0
        %205 = vmatpush1.msra.mxu0 %v177
        %206 = vmatprep.subr.mxu0 0.0
        %207 = vmatpush1.msra.mxu0 %v178
        %208 = vmatprep.subr.mxu0 0.0
        %209 = vmatpush1.msra.mxu0 0.0
        %210 = vmatprep.subr.mxu0 0.0
        %211 = vmatpush1.msra.mxu0 0.0
        %212 = vmatprep.subr.mxu0 0.0
        %213 = vmatpush1.msra.mxu0 0.0
        %214 = vmatprep.subr.mxu0 0.0
        %215 = vmatpush1.msra.mxu0 0.0
        %216 = vmatprep.subr.mxu0 0.0
        %217 = vmatpush1.msra.mxu0 0.0
        %218 = vmatprep.subr.mxu0 0.0
        %219 = vmatpush1.msra.mxu0 0.0
        %220 = vmatprep.subr.mxu0 0.0
        %221 = vmatpush1.msra.mxu0 0.0
        %222 = vmatprep.subr.mxu0 0.0
        %223 = vmatpush1.msra.mxu0 0.0
        %224 = vmatprep.subr.mxu0 0.0
        %225 = vmatpush1.msra.mxu0 0.0
        %226 = vmatprep.subr.mxu0 0.0
        %227 = vmatpush1.msra.mxu0 0.0
        %228 = vmatprep.subr.mxu0 0.0
        %229 = vmatpush1.msra.mxu0 0.0
        %230 = vmatprep.subr.mxu0 0.0
        %231 = vmatpush1.msra.mxu0 0.0
        %232 = vmatprep.subr.mxu0 0.0
        %233 = vmatpush1.msra.mxu0 0.0
        %234 = vmatprep.subr.mxu0 0.0
        %235 = vmatpush1.msra.mxu0 0.0
        %236 = vmatprep.subr.mxu0 0.0
        %237 = vmatpush1.msra.mxu0 0.0
        %238 = vmatprep.subr.mxu0 0.0
        %239 = vmatpush1.msra.mxu0 0.0
        %240 = vmatprep.subr.mxu0 0.0
        %241 = vmatpush1.msra.mxu0 0.0
        %242 = vmatprep.subr.mxu0 0.0
        %243 = vmatpush1.msra.mxu0 0.0
        %244 = vmatprep.subr.mxu0 0.0
        %245 = vmatpush1.msra.mxu0 0.0
        %246 = vmatprep.subr.mxu0 0.0
        %247 = vmatpush1.msra.mxu0 0.0
        %248 = vmatprep.subr.mxu0 0.0
        %249 = vmatpush1.msra.mxu0 0.0
        %250 = vmatprep.subr.mxu0 0.0
        %251 = vmatpush1.msra.mxu0 0.0
        %252 = vmatprep.subr.mxu0 0.0
        %253 = vmatpush1.msra.mxu0 0.0
        %254 = vmatprep.subr.mxu0 0.0
        %255 = vmatpush1.msra.mxu0 0.0
        %256 = vmatprep.subr.mxu0 0.0
        %257 = vmatpush1.msra.mxu0 0.0
        %258 = vmatprep.subr.mxu0 0.0
        %259 = vmatpush1.msra.mxu0 0.0
        %260 = vmatprep.subr.mxu0 0.0
        %261 = vmatpush1.msra.mxu0 0.0
        %262 = vmatprep.subr.mxu0 0.0
        %263 = vmatpush1.msra.mxu0 0.0
        %264 = vmatprep.subr.mxu0 0.0
        %265 = vmatpush1.msra.mxu0 0.0
        %266 = vmatprep.subr.mxu0 0.0
        %267 = vmatpush1.msra.mxu0 0.0
        %268 = vmatprep.mubr.f32.mxu0 0.0
        %269 = vmatmul.mubr.f32.gmra.mrb[0].mxu0 %v181
        %v270 = vpop.f32.mrb[0].mxu0
        %v271 = vadd.f32 0.0, %v270
        %v272 = vpop.f32.mrb[0].mxu0
        %273 = vmatprep.mubr.f32.mxu0 0.0
        %274 = vmatmul.mubr.f32.gmra.mrb[0].mxu0 %v184
        %v275 = vpop.f32.mrb[0].mxu0
        %v276 = vadd.f32 0.0, %v275
        %v277 = vpop.f32.mrb[0].mxu0
        %278 = vmatprep.mubr.f32.mxu0 0.0
        %279 = vmatmul.mubr.f32.gmra.mrb[0].mxu0 %v187
        %v280 = vpop.f32.mrb[0].mxu0
        %v281 = vadd.f32 0.0, %v280
        %v282 = vpop.f32.mrb[0].mxu0
        %283 = vmatprep.mubr.f32.mxu0 0.0
        %284 = vmatmul.mubr.f32.gmra.mrb[0].mxu0 %v190
        %v285 = vpop.f32.mrb[0].mxu0
        %v286 = vadd.f32 0.0, %v285
        %v287 = vpop.f32.mrb[0].mxu0
        %288 = vmatprep.mubr.f32.mxu0 0.0
        %289 = vmatmul.mubr.f32.gmra.mrb[0].mxu0 %v193
        %v290 = vpop.f32.mrb[0].mxu0
        %v291 = vadd.f32 0.0, %v290
        %v292 = vpop.f32.mrb[0].mxu0
        %293 = vmatprep.mubr.f32.mxu0 0.0
        %294 = vmatmul.mubr.f32.gmra.mrb[0].mxu0 %v196
        %v295 = vpop.f32.mrb[0].mxu0
        %v296 = vadd.f32 0.0, %v295
        %v297 = vpop.f32.mrb[0].mxu0
        %298 = vmatprep.mubr.f32.mxu0 0.0
        %299 = vmatmul.mubr.f32.gmra.mrb[0].mxu0 %v199
        %v300 = vpop.f32.mrb[0].mxu0
        %v301 = vadd.f32 0.0, %v300
        %v302 = vpop.f32.mrb[0].mxu0
        %303 = vmatprep.mubr.f32.mxu0 0.0
        %304 = vmatmul.mubr.f32.gmra.mrb[0].mxu0 %v202
        %v305 = vpop.f32.mrb[0].mxu0
        %v306 = vadd.f32 0.0, %v305
        %v307 = vpop.f32.mrb[0].mxu0
        %308 = vdwg.mxu0
        %v309 = vld [vmem:[%s2] sm:$0xff]
        %v310 = vld [vmem:[%s2 + $0x8] sm:$0xff]
        %v311 = vld [vmem:[%s2 + $0x10] sm:$0xff]
        %v312 = vld [vmem:[%s2 + $0x18] sm:$0xff]
        %v313 = vld [vmem:[%s2 + $0x20] sm:$0xff]
        %v314 = vld [vmem:[%s2 + $0x28] sm:$0xff]
        %v315 = vld [vmem:[%s2 + $0x30] sm:$0xff]
        %v316 = vld [vmem:[%s2 + $0x38] sm:$0xff]
        %vm317 = vcmask 523264
        %v319 = vsel %vm317, %v309, 0
        %v322 = vsel %vm317, %v310, 0
        %v325 = vsel %vm317, %v311, 0
        %v328 = vsel %vm317, %v312, 0
        %v331 = vsel %vm317, %v313, 0
        %v334 = vsel %vm317, %v314, 0
        %v337 = vsel %vm317, %v315, 0
        %v340 = vsel %vm317, %v316, 0
        %342 = vmatprep.subr.mxu0 0.0
        %343 = vmatpush1.msra.mxu0 %v271
        %344 = vmatprep.subr.mxu0 0.0
        %345 = vmatpush1.msra.mxu0 %v276
        %346 = vmatprep.subr.mxu0 0.0
        %347 = vmatpush1.msra.mxu0 %v281
        %348 = vmatprep.subr.mxu0 0.0
        %349 = vmatpush1.msra.mxu0 %v286
        %350 = vmatprep.subr.mxu0 0.0
        %351 = vmatpush1.msra.mxu0 %v291
        %352 = vmatprep.subr.mxu0 0.0
        %353 = vmatpush1.msra.mxu0 %v296
        %354 = vmatprep.subr.mxu0 0.0
        %355 = vmatpush1.msra.mxu0 %v301
        %356 = vmatprep.subr.mxu0 0.0
        %357 = vmatpush1.msra.mxu0 %v306
        %358 = vmatprep.subr.mxu0 0.0
        %359 = vmatpush1.msra.mxu0 0.0
        %360 = vmatprep.subr.mxu0 0.0
        %361 = vmatpush1.msra.mxu0 0.0
        %362 = vmatprep.subr.mxu0 0.0
        %363 = vmatpush1.msra.mxu0 0.0
        %364 = vmatprep.subr.mxu0 0.0
        %365 = vmatpush1.msra.mxu0 0.0
        %366 = vmatprep.subr.mxu0 0.0
        %367 = vmatpush1.msra.mxu0 0.0
        %368 = vmatprep.subr.mxu0 0.0
        %369 = vmatpush1.msra.mxu0 0.0
        %370 = vmatprep.subr.mxu0 0.0
        %371 = vmatpush1.msra.mxu0 0.0
        %372 = vmatprep.subr.mxu0 0.0
        %373 = vmatpush1.msra.mxu0 0.0
        %374 = vmatprep.subr.mxu0 0.0
        %375 = vmatpush1.msra.mxu0 0.0
        %376 = vmatprep.subr.mxu0 0.0
        %377 = vmatpush1.msra.mxu0 0.0
        %378 = vmatprep.subr.mxu0 0.0
        %379 = vmatpush1.msra.mxu0 0.0
        %380 = vmatprep.subr.mxu0 0.0
        %381 = vmatpush1.msra.mxu0 0.0
        %382 = vmatprep.subr.mxu0 0.0
        %383 = vmatpush1.msra.mxu0 0.0
        %384 = vmatprep.subr.mxu0 0.0
        %385 = vmatpush1.msra.mxu0 0.0
        %386 = vmatprep.subr.mxu0 0.0
        %387 = vmatpush1.msra.mxu0 0.0
        %388 = vmatprep.subr.mxu0 0.0
        %389 = vmatpush1.msra.mxu0 0.0
        %390 = vmatprep.subr.mxu0 0.0
        %391 = vmatpush1.msra.mxu0 0.0
        %392 = vmatprep.subr.mxu0 0.0
        %393 = vmatpush1.msra.mxu0 0.0
        %394 = vmatprep.subr.mxu0 0.0
        %395 = vmatpush1.msra.mxu0 0.0
        %396 = vmatprep.subr.mxu0 0.0
        %397 = vmatpush1.msra.mxu0 0.0
        %398 = vmatprep.subr.mxu0 0.0
        %399 = vmatpush1.msra.mxu0 0.0
        %400 = vmatprep.subr.mxu0 0.0
        %401 = vmatpush1.msra.mxu0 0.0
        %402 = vmatprep.subr.mxu0 0.0
        %403 = vmatpush1.msra.mxu0 0.0
        %404 = vmatprep.subr.mxu0 0.0
        %405 = vmatpush1.msra.mxu0 0.0
        %406 = vmatprep.mubr.f32.mxu0 0.0
        %407 = vmatmul.mubr.f32.gmra.mrb[0].mxu0 %v319
        %v408 = vpop.f32.mrb[0].mxu0
        %v409 = vadd.f32 0.0, %v408
        %v410 = vpop.f32.mrb[0].mxu0
        %411 = vmatprep.mubr.f32.mxu0 0.0
        %412 = vmatmul.mubr.f32.gmra.mrb[0].mxu0 %v322
        %v413 = vpop.f32.mrb[0].mxu0
        %v414 = vadd.f32 0.0, %v413
        %v415 = vpop.f32.mrb[0].mxu0
        %416 = vmatprep.mubr.f32.mxu0 0.0
        %417 = vmatmul.mubr.f32.gmra.mrb[0].mxu0 %v325
        %v418 = vpop.f32.mrb[0].mxu0
        %v419 = vadd.f32 0.0, %v418
        %v420 = vpop.f32.mrb[0].mxu0
        %421 = vmatprep.mubr.f32.mxu0 0.0
        %422 = vmatmul.mubr.f32.gmra.mrb[0].mxu0 %v328
        %v423 = vpop.f32.mrb[0].mxu0
        %v424 = vadd.f32 0.0, %v423
        %v425 = vpop.f32.mrb[0].mxu0
        %426 = vmatprep.mubr.f32.mxu0 0.0
        %427 = vmatmul.mubr.f32.gmra.mrb[0].mxu0 %v331
        %v428 = vpop.f32.mrb[0].mxu0
        %v429 = vadd.f32 0.0, %v428
        %v430 = vpop.f32.mrb[0].mxu0
        %431 = vmatprep.mubr.f32.mxu0 0.0
        %432 = vmatmul.mubr.f32.gmra.mrb[0].mxu0 %v334
        %v433 = vpop.f32.mrb[0].mxu0
        %v434 = vadd.f32 0.0, %v433
        %v435 = vpop.f32.mrb[0].mxu0
        %436 = vmatprep.mubr.f32.mxu0 0.0
        %437 = vmatmul.mubr.f32.gmra.mrb[0].mxu0 %v337
        %v438 = vpop.f32.mrb[0].mxu0
        %v439 = vadd.f32 0.0, %v438
        %v440 = vpop.f32.mrb[0].mxu0
        %441 = vmatprep.mubr.f32.mxu0 0.0
        %442 = vmatmul.mubr.f32.gmra.mrb[0].mxu0 %v340
        %v443 = vpop.f32.mrb[0].mxu0
        %v444 = vadd.f32 0.0, %v443
        %v445 = vpop.f32.mrb[0].mxu0
        %446 = vdwg.mxu0
        %vm447 = vcmask 64512
        %448 = vst.msk [vmem:[%s163] sm:$0xff] %vm447, %v409
        %449 = vst.msk [vmem:[%s163 + $0x8] sm:$0xff] %vm447, %v414
        %450 = vst.msk [vmem:[%s163 + $0x10] sm:$0xff] %vm447, %v419
        %451 = vst.msk [vmem:[%s163 + $0x18] sm:$0xff] %vm447, %v424
        %452 = vst.msk [vmem:[%s163 + $0x20] sm:$0xff] %vm447, %v429
        %453 = vst.msk [vmem:[%s163 + $0x28] sm:$0xff] %vm447, %v434
        %454 = vst.msk [vmem:[%s163 + $0x30] sm:$0xff] %vm447, %v439
        %455 = vst.msk [vmem:[%s163 + $0x38] sm:$0xff] %vm447, %v444
        %s456 = sand.u32 %s93, 1
        %s457 = scalar_lea.sflag [#allocation3], %s456
        %s458 = sand.u32 %s93, 1
        %s459 = smul.addr %s458, 64
        %s460 = scalar_lea.vmem [#allocation2], %s459
        // Predicated region
        $region33: #{_spatial_rescaler_forward.1} parent=31 // pred_check
          %p461 = pneg %p103
        $region34: #{_spatial_rescaler_forward.1} parent=31 // pred_check_branch
          %463 = sbr.rel (%p461) target = $region36
        $region35: #{_spatial_rescaler_forward.1} parent=31 // pred_region
          %s465 = ssub.s32 1024, 1024
          %466 = vsyncadd %s457, %s465
          %s467 = smul.addr %s17, 8
          %s468 = smul.addr %s467, 128
          %s469 = scalar_lea.hbm %s3, %s468
          %s470 = sshll.u32 %s460, 4
          %s471 = int_to_ptr.vmem [resolvable:$true] %s470
          %476 = dma.vmem_to_hbm [thread:$0]  %s471, 1024, %s469, %s457, 128, 128, 8
        $region36: #{_spatial_rescaler_forward.1} parent=31 // pred_fallthru
          _
      $region32: #{_spatial_rescaler_forward.1} parent=5 // pred_fallthru
        _
      %p477 = scmp.le.s32.totalorder 2, %s12
      // Predicated region
      $region37: #{_spatial_rescaler_forward.1} parent=5 // pred_check
        %p478 = pneg %p477
      $region38: #{_spatial_rescaler_forward.1} parent=5 // pred_check_branch
        %480 = sbr.rel (%p478) target = $region40
      $region39: #{_spatial_rescaler_forward.1} parent=5 // pred_region
        %s481 = ssub.s32 %s12, 2
        // Predicated region
        $region41: #{_spatial_rescaler_forward.1} parent=39 // pred_check
          %p482 = pneg %p109
        $region42: #{_spatial_rescaler_forward.1} parent=39 // pred_check_branch
          %484 = sbr.rel (%p482) target = $region44
        $region43: #{_spatial_rescaler_forward.1} parent=39 // pred_region
          %s485 = sand.u32 %s94, 1
          %s486 = scalar_lea.sflag [#allocation3], %s485
          %s487 = sand.u32 %s94, 1
          %s488 = smul.addr %s487, 64
          %s489 = scalar_lea.vmem [#allocation2], %s488
          %490 = dma.done %s486, 1024
        $region44: #{_spatial_rescaler_forward.1} parent=39 // pred_fallthru
          _
      $region40: #{_spatial_rescaler_forward.1} parent=5 // pred_fallthru
        _
    $region6: #{_spatial_rescaler_forward.1} parent=1 // loop_footer
      %s16 = sadd.s32 1, %s12
    $region7: #{_spatial_rescaler_forward.1} parent=1 // loop_footer_branch
      %11 = sbr.rel target = $region3
    $region8: #{_spatial_rescaler_forward.1} parent=1 // loop_exit
      _
    %491 = vsyncpa [#allocation3], 1
    %s492 = scalar_lea.sflag [#allocation3], 1
    %493 = vsyncpa %s492, 1

</llo_original>
